<compile_context>
chip_gen: v7x
topology: tpu7x:2x2x1
jax: 0.10.0
libtpu: 0.0.40
codegen_flags: <defaults>
</compile_context>

<pallas_src>
import functools

import jax
import jax.numpy as jnp
from jax.experimental import pallas as pl
from jax.experimental.pallas import tpu as pltpu


def _res_ar_kernel(x_ref, halo_ref, wd_ref, bd_ref, alpha_ref, wcat_ref, bcat_ref,
                   y_ref, sh_ref, win_ref,
                   *, kwidth, dilation, ninp, P, Pw, tile_t):
    """Per (batch, time-tile) fused kernel.  Layout is channels-first (C, T).

    x_ref    : (1, ninp, tile_t)          input tile (single read, also residual)
    halo_ref : (1, 1, ninp, max(P,1))     last P (zero-padded) samples before tile start
    wd_ref   : (kwidth, fmaps, ninp) f32  per-tap dilated-conv weights
    bd_ref   : (fmaps, 1)            f32  dilated-conv bias
    alpha_ref: (fmaps, 1)            f32  PReLU per-channel slope (init=0 -> ReLU)
    wcat_ref : (ninp+res_fmaps, fmaps) f32  stacked 1x1 skip+res weights
    bcat_ref : (ninp+res_fmaps, 1)   f32  stacked 1x1 biases
    y_ref    : (1, ninp, tile_t)
    sh_ref   : (1, res_fmaps, tile_t)
    win_ref  : (ninp, Pw + tile_t)   f32  staged padded window  [pad | halo(P) | x]
    """
    fmaps = wd_ref.shape[1]

    # Stage the padded window once: two stores total (tiny halo + lane-aligned x).
    if P > 0:
        win_ref[:, Pw - P:Pw] = halo_ref[0, 0]
    win_ref[:, Pw:] = x_ref[0]

    # Dilated causal conv: kwidth accumulating MXU matmuls over shifted
    # read-only views of the window (no per-tap staging stores).
    acc = jnp.zeros((fmaps, tile_t), jnp.float32)
    for k in range(kwidth):                       # static, kwidth is small
        s = Pw - P + k * dilation
        acc = acc + jnp.dot(wd_ref[k], win_ref[:, s:s + tile_t],
                            preferred_element_type=jnp.float32)
    h = acc + bd_ref[...]

    # PReLU (per-channel alpha; alpha == 0 -> ReLU)
    a = jnp.where(h > 0.0, h, alpha_ref[...] * h)

    # Fused 1x1 skip + res convs: one MXU matmul, rows split afterwards.
    o2 = jnp.dot(wcat_ref[...], a, preferred_element_type=jnp.float32)
    o2 = o2 + bcat_ref[...]

    y_ref[0] = (x_ref[0] + o2[0:ninp, :]).astype(y_ref.dtype)
    sh_ref[0] = o2[ninp:, :].astype(sh_ref.dtype)


def _vmem_limit_bytes():
    """Generation-aware scoped-VMEM limit (~3/4 of capacity, capped at 100 MiB)."""
    try:
        cap = int(pltpu.get_tpu_info().vmem_capacity_bytes)
    except Exception:
        cap = 64 * 1024 * 1024        # safe default (v7x-sized)
    return max(32 * 1024 * 1024, min(cap * 3 // 4, 100 * 1024 * 1024))


def _pick_time_tile(T, *, ninp, fmaps, res_fmaps, out_bytes, vmem_budget,
                    max_cap=16384):
    """Largest time tile fitting ~half the VMEM budget (whole T when it fits)."""
    per_col = (2 * ninp * 4                 # x tile, double-buffered
               + 2 * ninp * out_bytes       # y tile, double-buffered
               + 2 * res_fmaps * out_bytes  # sh tile, double-buffered
               + ninp * 4                   # window scratch
               + 3 * fmaps * 4)             # conv / PReLU / 1x1 intermediates
    budget_cols = max(128, (vmem_budget // 2) // per_col)
    cap = min(budget_cols, max_cap)
    if T <= cap:
        return T
    c = (cap // 128) * 128
    while c >= 128:                          # largest 128-multiple divisor of T
        if T % c == 0:
            return c
        c -= 128
    # No 128-multiple divisor <= cap: fall back to whole T (still correct).
    return T


def res_ar_module_forward(x_ncw, params, *, kwidth, dilation,
                          out_dtype=jnp.float32, tile_t=None):
    """x_ncw: (B, ninp, T) float32 (PyTorch NCW).  Returns (y, sh) in NCW."""
    B, ninp, T = x_ncw.shape
    P = (kwidth - 1) * dilation

    wd, bd, alpha = params["wd"], params["bd"], params["alpha"]
    ws, bs, wr, br = params["ws"], params["bs"], params["wr"], params["br"]
    fmaps = wd.shape[0]
    res_fmaps = wr.shape[0]

    vmem_limit = _vmem_limit_bytes()
    out_bytes = jnp.dtype(out_dtype).itemsize
    if tile_t is None:
        tile_t = _pick_time_tile(T, ninp=ninp, fmaps=fmaps, res_fmaps=res_fmaps,
                                 out_bytes=out_bytes, vmem_budget=vmem_limit)
    assert T % tile_t == 0, "time tile must divide T"
    n_t = T // tile_t
    P_h = max(P, 1)
    Pw = (-(-P // 128)) * 128 if P > 0 else 0     # halo region rounded to lane tile

    x_f32 = x_ncw.astype(jnp.float32)

    # Per-tile causal halo: halo[b, t] = zero-padded x[b, :, t*tile_t - P : t*tile_t].
    if P > 0:
        xp = jnp.pad(x_f32, ((0, 0), (0, 0), (P, 0)))               # (B, ninp, P+T)
        halo = jnp.stack([xp[:, :, t * tile_t:t * tile_t + P] for t in range(n_t)],
                         axis=1)                                    # (B, n_t, ninp, P)
    else:
        halo = jnp.zeros((B, n_t, ninp, P_h), jnp.float32)

    # Weight packing (once per call, plain JAX, negligible).
    wd_taps = jnp.transpose(wd, (2, 0, 1)).astype(jnp.float32)      # (kwidth, fmaps, ninp)
    bd2 = bd.reshape(fmaps, 1).astype(jnp.float32)
    alpha2 = alpha.reshape(fmaps, 1).astype(jnp.float32)
    w_cat = jnp.concatenate([ws, wr], axis=0).astype(jnp.float32)   # (ninp+res_fmaps, fmaps)
    b_cat = jnp.concatenate([bs, br]).reshape(ninp + res_fmaps, 1).astype(jnp.float32)

    kern = functools.partial(_res_ar_kernel, kwidth=kwidth, dilation=dilation,
                             ninp=ninp, P=P, Pw=Pw, tile_t=tile_t)

    cost = pl.CostEstimate(
        flops=2 * B * T * fmaps * (kwidth * ninp + ninp + res_fmaps),
        transcendentals=0,
        bytes_accessed=B * T * (ninp * 4 + (ninp + res_fmaps) * out_bytes)
        + B * n_t * ninp * P_h * 4,
    )

    y, sh = pl.pallas_call(
        kern,
        out_shape=(jax.ShapeDtypeStruct((B, ninp, T), out_dtype),
                   jax.ShapeDtypeStruct((B, res_fmaps, T), out_dtype)),
        grid_spec=pltpu.PrefetchScalarGridSpec(
            num_scalar_prefetch=0,
            grid=(B, n_t),
            in_specs=[
                pl.BlockSpec((1, ninp, tile_t), lambda b, t: (b, 0, t)),        # x
                pl.BlockSpec((1, 1, ninp, P_h), lambda b, t: (b, t, 0, 0)),     # halo
                pl.BlockSpec((kwidth, fmaps, ninp), lambda b, t: (0, 0, 0)),    # wd_taps
                pl.BlockSpec((fmaps, 1), lambda b, t: (0, 0)),                  # bd
                pl.BlockSpec((fmaps, 1), lambda b, t: (0, 0)),                  # alpha
                pl.BlockSpec((ninp + res_fmaps, fmaps), lambda b, t: (0, 0)),   # w_cat
                pl.BlockSpec((ninp + res_fmaps, 1), lambda b, t: (0, 0)),       # b_cat
            ],
            out_specs=[
                pl.BlockSpec((1, ninp, tile_t), lambda b, t: (b, 0, t)),        # y
                pl.BlockSpec((1, res_fmaps, tile_t), lambda b, t: (b, 0, t)),   # sh
            ],
            scratch_shapes=[
                pltpu.VMEM((ninp, Pw + tile_t), jnp.float32),                   # staged window
            ],
        ),
        compiler_params=pltpu.CompilerParams(
            dimension_semantics=("parallel", "parallel"),
            vmem_limit_bytes=vmem_limit,
        ),
        cost_estimate=cost,
    )(x_f32, halo, wd_taps, bd2, alpha2, w_cat, b_cat)

    return y, sh


def _reference(x, params, *, kwidth, dilation):
    """Pure-jnp f32 reference with PyTorch-identical math (for verification)."""
    B, ninp, T = x.shape
    P = (kwidth - 1) * dilation
    xp = jnp.pad(x, ((0, 0), (0, 0), (P, 0)))
    wd, bd, alpha = params["wd"], params["bd"], params["alpha"]
    ws, bs, wr, br = params["ws"], params["bs"], params["wr"], params["br"]
    fmaps = wd.shape[0]
    h = jnp.zeros((B, fmaps, T), jnp.float32)
    for k in range(kwidth):
        off = k * dilation
        h = h + jnp.einsum("fc,bct->bft", wd[:, :, k], xp[:, :, off:off + T])
    h = h + bd[None, :, None]
    a = jnp.where(h > 0, h, alpha[None, :, None] * h)
    y = x + jnp.einsum("cf,bft->bct", ws, a) + bs[None, :, None]
    sh = jnp.einsum("rf,bft->brt", wr, a) + br[None, :, None]
    return y, sh


def init_params(key, ninp, fmaps, res_fmaps, kwidth):
    """Deterministic params, stored in torch Conv1d / PReLU conventions."""
    ks = jax.random.split(key, 6)
    wd = 0.1 * jax.random.normal(ks[0], (fmaps, ninp, kwidth), jnp.float32)   # dil_conv weight
    bd = 0.1 * jax.random.normal(ks[1], (fmaps,), jnp.float32)
    alpha = jnp.zeros((fmaps,), jnp.float32)                                  # PReLU(fmaps, init=0)
    ws = 0.1 * jax.random.normal(ks[2], (ninp, fmaps), jnp.float32)           # conv_1x1_skip
    bs = 0.1 * jax.random.normal(ks[3], (ninp,), jnp.float32)
    wr = 0.1 * jax.random.normal(ks[4], (res_fmaps, fmaps), jnp.float32)      # conv_1x1_res
    br = 0.1 * jax.random.normal(ks[5], (res_fmaps,), jnp.float32)
    return dict(wd=wd, bd=bd, alpha=alpha, ws=ws, bs=bs, wr=wr, br=br)


if __name__ == "__main__":
    # Small shapes consistent with ResARModule(ninp, fmaps, res_fmaps, kwidth, dilation)
    B, ninp, fmaps, res_fmaps, kwidth, dilation, T = 2, 8, 16, 8, 3, 2, 16

    key = jax.random.PRNGKey(0)
    kx, kp = jax.random.split(key)
    x = jax.random.normal(kx, (B, ninp, T), jnp.float32)   # PyTorch NCW input
    params = init_params(kp, ninp, fmaps, res_fmaps, kwidth)

    y, sh = res_ar_module_forward(x, params, kwidth=kwidth, dilation=dilation)
    y = jax.block_until_ready(y)
    sh = jax.block_until_ready(sh)

    y_ref, sh_ref = _reference(x, params, kwidth=kwidth, dilation=dilation)
    assert y.shape == (B, ninp, T) and sh.shape == (B, res_fmaps, T)
    assert jnp.allclose(y, y_ref, atol=1e-2, rtol=1e-2)
    assert jnp.allclose(sh, sh_ref, atol=1e-2, rtol=1e-2)

    # Multi-tile time axis: fully parallel grid, halo from the precomputed input.
    T2, tile2 = 256, 128
    x2 = jax.random.normal(jax.random.PRNGKey(1), (B, ninp, T2), jnp.float32)
    y2, sh2 = res_ar_module_forward(x2, params, kwidth=kwidth, dilation=dilation,
                                    tile_t=tile2)
    jax.block_until_ready((y2, sh2))
    y2_ref, sh2_ref = _reference(x2, params, kwidth=kwidth, dilation=dilation)
    assert jnp.allclose(y2, y2_ref, atol=1e-2, rtol=1e-2)
    assert jnp.allclose(sh2, sh2_ref, atol=1e-2, rtol=1e-2)

    # Deep dilation: receptive field P (=128) >= tile_t (previously unsupported).
    dil3 = 64
    y3, sh3 = res_ar_module_forward(x2, params, kwidth=kwidth, dilation=dil3,
                                    tile_t=tile2)
    jax.block_until_ready((y3, sh3))
    y3_ref, sh3_ref = _reference(x2, params, kwidth=kwidth, dilation=dil3)
    assert jnp.allclose(y3, y3_ref, atol=1e-2, rtol=1e-2)
    assert jnp.allclose(sh3, sh3_ref, atol=1e-2, rtol=1e-2)

    print("KERNEL_OK")
</pallas_src>

<mosaic_0001>
module attributes {stable_mosaic.version = 11 : i64} {
  func.func @_res_ar_kernel(%arg0: i32, %arg1: i32, %arg2: memref<1x8x16xf32, #tpu.memory_space<vmem>>, %arg3: memref<1x1x8x4xf32, #tpu.memory_space<vmem>>, %arg4: memref<3x16x8xf32, #tpu.memory_space<vmem>>, %arg5: memref<16x1xf32, #tpu.memory_space<vmem>>, %arg6: memref<16x1xf32, #tpu.memory_space<vmem>>, %arg7: memref<16x16xf32, #tpu.memory_space<vmem>>, %arg8: memref<16x1xf32, #tpu.memory_space<vmem>>, %arg9: memref<1x8x16xf32, #tpu.memory_space<vmem>>, %arg10: memref<1x8x16xf32, #tpu.memory_space<vmem>>, %arg11: memref<8x144xf32, #tpu.memory_space<vmem>>) attributes {dimension_semantics = [#tpu.dimension_semantics<parallel>, #tpu.dimension_semantics<parallel>], iteration_bounds = array<i64: 2, 1>, scalar_prefetch = 0 : i64, scratch_operands = 1 : i64, tpu.core_type = #tpu.core_type<tc>, window_params = [{transform_indices = @transform_0, window_bounds = array<i64: 1, 8, 16>}, {transform_indices = @transform_1, window_bounds = array<i64: 1, 1, 8, 4>}, {pipeline_mode = #tpu.pipeline_mode<synchronous>, transform_indices = @transform_2, window_bounds = array<i64: 3, 16, 8>}, {pipeline_mode = #tpu.pipeline_mode<synchronous>, transform_indices = @transform_3, window_bounds = array<i64: 16, 1>}, {pipeline_mode = #tpu.pipeline_mode<synchronous>, transform_indices = @transform_4, window_bounds = array<i64: 16, 1>}, {pipeline_mode = #tpu.pipeline_mode<synchronous>, transform_indices = @transform_5, window_bounds = array<i64: 16, 16>}, {pipeline_mode = #tpu.pipeline_mode<synchronous>, transform_indices = @transform_6, window_bounds = array<i64: 16, 1>}, {transform_indices = @transform_7, window_bounds = array<i64: 1, 8, 16>}, {transform_indices = @transform_8, window_bounds = array<i64: 1, 8, 16>}]} {
    %c0 = arith.constant 0 : index
    %c0_0 = arith.constant 0 : index
    %c0_1 = arith.constant 0 : index
    %c0_2 = arith.constant 0 : index
    %0 = vector.load %arg3[%c0, %c0_0, %c0_1, %c0_2] : memref<1x1x8x4xf32, #tpu.memory_space<vmem>>, vector<1x1x8x4xf32>
    %1 = vector.shape_cast %0 : vector<1x1x8x4xf32> to vector<8x4xf32>
    %c0_3 = arith.constant 0 : index
    %c124 = arith.constant 124 : index
    %2 = vector.load %arg11[%c0_3, %c124] : memref<8x144xf32, #tpu.memory_space<vmem>>, vector<8x4xf32>
    tpu.vector_store %arg11[%c0_3, %c124], %1 {strides = array<i32>} : memref<8x144xf32, #tpu.memory_space<vmem>>, vector<8x4xf32>,
    %c0_4 = arith.constant 0 : index
    %c0_5 = arith.constant 0 : index
    %c0_6 = arith.constant 0 : index
    %3 = vector.load %arg2[%c0_4, %c0_5, %c0_6] : memref<1x8x16xf32, #tpu.memory_space<vmem>>, vector<1x8x16xf32>
    %4 = vector.shape_cast %3 : vector<1x8x16xf32> to vector<8x16xf32>
    %c0_7 = arith.constant 0 : index
    %c128 = arith.constant 128 : index
    %5 = vector.load %arg11[%c0_7, %c128] : memref<8x144xf32, #tpu.memory_space<vmem>>, vector<8x16xf32>
    tpu.vector_store %arg11[%c0_7, %c128], %4 {strides = array<i32>} : memref<8x144xf32, #tpu.memory_space<vmem>>, vector<8x16xf32>,
    %cst = arith.constant 0.000000e+00 : f32
    %6 = vector.broadcast %cst : f32 to vector<16x16xf32>
    %c0_8 = arith.constant 0 : index
    %c0_9 = arith.constant 0 : index
    %c0_10 = arith.constant 0 : index
    %7 = vector.load %arg4[%c0_8, %c0_9, %c0_10] : memref<3x16x8xf32, #tpu.memory_space<vmem>>, vector<1x16x8xf32>
    %8 = vector.shape_cast %7 : vector<1x16x8xf32> to vector<16x8xf32>
    %c0_11 = arith.constant 0 : index
    %c124_12 = arith.constant 124 : index
    %9 = vector.load %arg11[%c0_11, %c124_12] : memref<8x144xf32, #tpu.memory_space<vmem>>, vector<8x16xf32>
    %cst_13 = arith.constant dense<0.000000e+00> : vector<16x16xf32>
    %10 = tpu.matmul %8, %9, %cst_13 {dimension_numbers = #tpu.dot_dimension_numbers<[1], [0], [0], [1], [0, 0, 1, 1], [], []>} : vector<16x8xf32>, vector<8x16xf32>, vector<16x16xf32> -> vector<16x16xf32>
    %11 = arith.addf %6, %10 : vector<16x16xf32>
    %c1 = arith.constant 1 : index
    %c0_14 = arith.constant 0 : index
    %c0_15 = arith.constant 0 : index
    %12 = vector.load %arg4[%c1, %c0_14, %c0_15] : memref<3x16x8xf32, #tpu.memory_space<vmem>>, vector<1x16x8xf32>
    %13 = vector.shape_cast %12 : vector<1x16x8xf32> to vector<16x8xf32>
    %c0_16 = arith.constant 0 : index
    %c126 = arith.constant 126 : index
    %14 = vector.load %arg11[%c0_16, %c126] : memref<8x144xf32, #tpu.memory_space<vmem>>, vector<8x16xf32>
    %cst_17 = arith.constant dense<0.000000e+00> : vector<16x16xf32>
    %15 = tpu.matmul %13, %14, %cst_17 {dimension_numbers = #tpu.dot_dimension_numbers<[1], [0], [0], [1], [0, 0, 1, 1], [], []>} : vector<16x8xf32>, vector<8x16xf32>, vector<16x16xf32> -> vector<16x16xf32>
    %16 = arith.addf %11, %15 : vector<16x16xf32>
    %c2 = arith.constant 2 : index
    %c0_18 = arith.constant 0 : index
    %c0_19 = arith.constant 0 : index
    %17 = vector.load %arg4[%c2, %c0_18, %c0_19] : memref<3x16x8xf32, #tpu.memory_space<vmem>>, vector<1x16x8xf32>
    %18 = vector.shape_cast %17 : vector<1x16x8xf32> to vector<16x8xf32>
    %c0_20 = arith.constant 0 : index
    %c128_21 = arith.constant 128 : index
    %19 = vector.load %arg11[%c0_20, %c128_21] : memref<8x144xf32, #tpu.memory_space<vmem>>, vector<8x16xf32>
    %cst_22 = arith.constant dense<0.000000e+00> : vector<16x16xf32>
    %20 = tpu.matmul %18, %19, %cst_22 {dimension_numbers = #tpu.dot_dimension_numbers<[1], [0], [0], [1], [0, 0, 1, 1], [], []>} : vector<16x8xf32>, vector<8x16xf32>, vector<16x16xf32> -> vector<16x16xf32>
    %21 = arith.addf %16, %20 : vector<16x16xf32>
    %c0_23 = arith.constant 0 : index
    %c0_24 = arith.constant 0 : index
    %22 = vector.load %arg5[%c0_23, %c0_24] : memref<16x1xf32, #tpu.memory_space<vmem>>, vector<16x1xf32>
    %23 = vector.broadcast %22 : vector<16x1xf32> to vector<16x16xf32>
    %24 = arith.addf %21, %23 : vector<16x16xf32>
    %cst_25 = arith.constant 0.000000e+00 : f32
    %25 = vector.broadcast %cst_25 : f32 to vector<16x16xf32>
    %26 = arith.cmpf ogt, %24, %25 : vector<16x16xf32>
    %c0_26 = arith.constant 0 : index
    %c0_27 = arith.constant 0 : index
    %27 = vector.load %arg6[%c0_26, %c0_27] : memref<16x1xf32, #tpu.memory_space<vmem>>, vector<16x1xf32>
    %28 = vector.broadcast %27 : vector<16x1xf32> to vector<16x16xf32>
    %29 = arith.mulf %28, %24 : vector<16x16xf32>
    %30 = arith.select %26, %24, %29 : vector<16x16xi1>, vector<16x16xf32>
    %c0_28 = arith.constant 0 : index
    %c0_29 = arith.constant 0 : index
    %31 = vector.load %arg7[%c0_28, %c0_29] : memref<16x16xf32, #tpu.memory_space<vmem>>, vector<16x16xf32>
    %cst_30 = arith.constant dense<0.000000e+00> : vector<16x16xf32>
    %32 = tpu.matmul %31, %30, %cst_30 {dimension_numbers = #tpu.dot_dimension_numbers<[1], [0], [0], [1], [0, 0, 1, 1], [], []>} : vector<16x16xf32>, vector<16x16xf32>, vector<16x16xf32> -> vector<16x16xf32>
    %c0_31 = arith.constant 0 : index
    %c0_32 = arith.constant 0 : index
    %33 = vector.load %arg8[%c0_31, %c0_32] : memref<16x1xf32, #tpu.memory_space<vmem>>, vector<16x1xf32>
    %34 = vector.broadcast %33 : vector<16x1xf32> to vector<16x16xf32>
    %35 = arith.addf %32, %34 : vector<16x16xf32>
    %c0_33 = arith.constant 0 : index
    %c0_34 = arith.constant 0 : index
    %c0_35 = arith.constant 0 : index
    %36 = vector.load %arg2[%c0_33, %c0_34, %c0_35] : memref<1x8x16xf32, #tpu.memory_space<vmem>>, vector<1x8x16xf32>
    %37 = vector.shape_cast %36 : vector<1x8x16xf32> to vector<8x16xf32>
    %38 = vector.extract_strided_slice %35 {offsets = [0, 0], sizes = [8, 16], strides = [1, 1]} : vector<16x16xf32> to vector<8x16xf32>
    %39 = arith.addf %37, %38 : vector<8x16xf32>
    %c0_36 = arith.constant 0 : index
    %c0_37 = arith.constant 0 : index
    %c0_38 = arith.constant 0 : index
    %40 = vector.load %arg9[%c0_36, %c0_37, %c0_38] : memref<1x8x16xf32, #tpu.memory_space<vmem>>, vector<1x8x16xf32>
    %41 = vector.shape_cast %40 : vector<1x8x16xf32> to vector<8x16xf32>
    %42 = vector.shape_cast %39 : vector<8x16xf32> to vector<1x8x16xf32>
    tpu.vector_store %arg9[%c0_36, %c0_37, %c0_38], %42 {strides = array<i32>} : memref<1x8x16xf32, #tpu.memory_space<vmem>>, vector<1x8x16xf32>,
    %43 = vector.extract_strided_slice %35 {offsets = [8, 0], sizes = [8, 16], strides = [1, 1]} : vector<16x16xf32> to vector<8x16xf32>
    %c0_39 = arith.constant 0 : index
    %c0_40 = arith.constant 0 : index
    %c0_41 = arith.constant 0 : index
    %44 = vector.load %arg10[%c0_39, %c0_40, %c0_41] : memref<1x8x16xf32, #tpu.memory_space<vmem>>, vector<1x8x16xf32>
    %45 = vector.shape_cast %44 : vector<1x8x16xf32> to vector<8x16xf32>
    %46 = vector.shape_cast %43 : vector<8x16xf32> to vector<1x8x16xf32>
    tpu.vector_store %arg10[%c0_39, %c0_40, %c0_41], %46 {strides = array<i32>} : memref<1x8x16xf32, #tpu.memory_space<vmem>>, vector<1x8x16xf32>,
    return
  }
  func.func @transform_0(%arg0: i32, %arg1: i32) -> (i32, i32, i32) {
    %c0_i32 = arith.constant 0 : i32
    %c0_i32_0 = arith.constant 0 : i32
    return %arg0, %c0_i32, %arg1 : i32, i32, i32
  }
  func.func @transform_1(%arg0: i32, %arg1: i32) -> (i32, i32, i32, i32) {
    %c0_i32 = arith.constant 0 : i32
    %c0_i32_0 = arith.constant 0 : i32
    %c0_i32_1 = arith.constant 0 : i32
    return %arg0, %arg1, %c0_i32, %c0_i32_0 : i32, i32, i32, i32
  }
  func.func @transform_2(%arg0: i32, %arg1: i32) -> (i32, i32, i32) {
    %c0_i32 = arith.constant 0 : i32
    %c0_i32_0 = arith.constant 0 : i32
    %c0_i32_1 = arith.constant 0 : i32
    %c0_i32_2 = arith.constant 0 : i32
    return %c0_i32, %c0_i32_0, %c0_i32_1 : i32, i32, i32
  }
  func.func @transform_3(%arg0: i32, %arg1: i32) -> (i32, i32) {
    %c0_i32 = arith.constant 0 : i32
    %c0_i32_0 = arith.constant 0 : i32
    %c0_i32_1 = arith.constant 0 : i32
    return %c0_i32, %c0_i32_0 : i32, i32
  }
  func.func @transform_4(%arg0: i32, %arg1: i32) -> (i32, i32) {
    %c0_i32 = arith.constant 0 : i32
    %c0_i32_0 = arith.constant 0 : i32
    %c0_i32_1 = arith.constant 0 : i32
    return %c0_i32, %c0_i32_0 : i32, i32
  }
  func.func @transform_5(%arg0: i32, %arg1: i32) -> (i32, i32) {
    %c0_i32 = arith.constant 0 : i32
    %c0_i32_0 = arith.constant 0 : i32
    %c0_i32_1 = arith.constant 0 : i32
    return %c0_i32, %c0_i32_0 : i32, i32
  }
  func.func @transform_6(%arg0: i32, %arg1: i32) -> (i32, i32) {
    %c0_i32 = arith.constant 0 : i32
    %c0_i32_0 = arith.constant 0 : i32
    %c0_i32_1 = arith.constant 0 : i32
    return %c0_i32, %c0_i32_0 : i32, i32
  }
  func.func @transform_7(%arg0: i32, %arg1: i32) -> (i32, i32, i32) {
    %c0_i32 = arith.constant 0 : i32
    %c0_i32_0 = arith.constant 0 : i32
    return %arg0, %c0_i32, %arg1 : i32, i32, i32
  }
  func.func @transform_8(%arg0: i32, %arg1: i32) -> (i32, i32, i32) {
    %c0_i32 = arith.constant 0 : i32
    %c0_i32_0 = arith.constant 0 : i32
    return %arg0, %c0_i32, %arg1 : i32, i32, i32
  }
}

</mosaic_0001>

<llo_original>
// kernel: tpu_custom_call.1
$region0: #{tpu_custom_call.1}
  #allocation0 [shape = 'u32[]', space=smem, size = 0x4, offset = 0x4, fixed_abs, tag = 'smem constant byte address 0x4 - core index']
  #allocation1 [shape = 'u32[144,128]{1,0:T(1,128)}', space=vmem, size = 0x12000, scoped, tag = 'internal scratch']
  #allocation2 [shape = 'f32[8,144]{1,0:T(8,128)}', space=vmem, size = 0x2000, scoped, tag = 'scratch operand']
  %s0 = inlined_call_operand.vmem [shape: f32[2,8,16], index: 0, kind: input, shape index: {}]
  %s1 = inlined_call_operand.vmem [shape: f32[2,1,8,4], index: 1, kind: input, shape index: {}]
  %s2 = inlined_call_operand.vmem [shape: f32[3,16,8], index: 2, kind: input, shape index: {}]
  %s3 = inlined_call_operand.vmem [shape: f32[16,1], index: 3, kind: input, shape index: {}]
  %s4 = inlined_call_operand.vmem [shape: f32[16,1], index: 4, kind: input, shape index: {}]
  %s5 = inlined_call_operand.vmem [shape: f32[16,16], index: 5, kind: input, shape index: {}]
  %s6 = inlined_call_operand.vmem [shape: f32[16,1], index: 6, kind: input, shape index: {}]
  %s7 = inlined_call_operand.hbm [shape: f32[2,8,16], index: 7, kind: output, shape index: {0}]
  %s8 = inlined_call_operand.hbm [shape: f32[2,8,16], index: 8, kind: output, shape index: {1}]
  %9 = xla_tuple %s7, %s8
  %s10 = sld [smem:[#allocation0]]
  $region69: #{tpu_custom_call.1} parent=0
    _
  %s12 = ssub.s32 1, %s10
  %s13 = scalar_select 0, %s12, %s10
  $region1: #{tpu_custom_call.1} parent=0
    #allocation3 [shape = 'u8[8192]{0}', space=vmem, size = 0x2000, scoped, tag = 'output window, operand 0']
    #allocation4 [shape = 's32[2]{0}', space=sflag, size = 0x8, scoped, tag = 'scoped memory for tpu_custom_call.1']
    #allocation5 [shape = 'u8[8192]{0}', space=vmem, size = 0x2000, scoped, tag = 'output window, operand 1']
    #allocation6 [shape = 's32[2]{0}', space=sflag, size = 0x8, scoped, tag = 'scoped memory for tpu_custom_call.1']
    %14 = vsyncpa [#allocation4], 0
    %s15 = scalar_lea.sflag [#allocation4], 1
    %16 = vsyncpa %s15, 0
    %17 = vsyncpa [#allocation6], 0
    %s18 = scalar_lea.sflag [#allocation6], 1
    %19 = vsyncpa %s18, 0
    loop: start=0, step=1, limit=4
    $region2: #{tpu_custom_call.1} parent=1 // loop_pre_header
      _
    $region3: #{tpu_custom_call.1} parent=1 // loop_header
      %s21 = sphi 0, %s25
      %p22 = scmp.ge.s32.totalorder %s21, 4
      %s28 = sphi 0, %s40
      %s29 = sphi 0, %s36
      %s30 = sphi 0, %s28
      %s31 = sphi 0, %s29
      %s32 = sphi 0, %s30
      %s33 = sphi 0, %s31
      %s45 = sphi 0, %s47
      %s48 = sphi 0, %s45
      %s49 = sphi 0, %s48
      %s65 = sphi 0, %s49
      %s73 = sphi 0, %s75
      %s76 = sphi 0, %s73
      %s77 = sphi 0, %s76
      %s93 = sphi 0, %s77
      %s97 = sphi 0, %s97
      %s99 = sphi 0, %s97
      %s100 = sphi 0, %s99
      %s114 = sphi 0, %s100
      %s118 = sphi 0, %s118
      %s120 = sphi 0, %s118
      %s121 = sphi 0, %s120
      %s135 = sphi 0, %s121
      %s139 = sphi 0, %s139
      %s141 = sphi 0, %s139
      %s142 = sphi 0, %s141
      %s156 = sphi 0, %s142
      %s160 = sphi 0, %s160
      %s162 = sphi 0, %s160
      %s163 = sphi 0, %s162
      %s177 = sphi 0, %s163
      %s181 = sphi 0, %s181
      %s183 = sphi 0, %s181
      %s184 = sphi 0, %s183
      %s198 = sphi 0, %s184
      %s206 = sphi 0, %s208
      %s209 = sphi 0, %s206
      %s210 = sphi 0, %s209
      %s226 = sphi 0, %s210
      %s234 = sphi 0, %s236
      %s237 = sphi 0, %s234
      %s238 = sphi 0, %s237
      %s254 = sphi 0, %s238
    $region4: #{tpu_custom_call.1} parent=1 // loop_header_branch
      %24 = sbr.rel (%p22) target = $region8
    $region5: #{tpu_custom_call.1} parent=1 // loop_body
      %s26 = ssub.s32 %s21, 1
      %s27 = ssub.s32 %s21, 2
      %s34 = sadd.s32 1, %s29
      %p35 = scmp.ge.s32.totalorder %s34, 1
      %s36 = scalar_select %p35, 0, %s34
      %s37 = sadd.s32 1, %s28
      %s38 = scalar_select %p35, %s37, %s28
      %p39 = scmp.ge.s32.totalorder %s38, 2
      %s40 = scalar_select %p39, 0, %s38
      %s41 = ssub.s32 %s28, %s40
      %s42 = ssub.s32 %s29, %s36
      %s43 = sor.u32 %s41, %s42
      %p44 = scmp.eq.s32.totalorder %s43, 0
      %s46 = sadd.s32 %s45, 1
      %s47 = scalar_select %p44, %s45, %s46
      %p50 = pneg %p44
      %p51 = scmp.eq.s32.totalorder %s21, 1
      %p52 = por %p50, %p51
      %p53 = scmp.ne.s32.totalorder %s45, %s48
      %p54 = scmp.eq.s32.totalorder %s21, 0
      %p55 = por %p53, %p54
      %p56 = scmp.ne.s32.totalorder %s45, %s48
      %p57 = scmp.eq.s32.totalorder %s26, 1
      %p58 = por %p56, %p57
      %p59 = scmp.ne.s32.totalorder %s48, %s49
      %p60 = scmp.eq.s32.totalorder %s26, 0
      %p61 = por %p59, %p60
      %p62 = scmp.ne.s32.totalorder %s48, %s49
      %p63 = scmp.eq.s32.totalorder %s27, 1
      %p64 = por %p62, %p63
      %p66 = scmp.ne.s32.totalorder %s49, %s65
      %p67 = scmp.eq.s32.totalorder %s27, 0
      %p68 = por %p66, %p67
      %s69 = ssub.s32 %s28, %s40
      %s70 = ssub.s32 %s29, %s36
      %s71 = sor.u32 %s69, %s70
      %p72 = scmp.eq.s32.totalorder %s71, 0
      %s74 = sadd.s32 %s73, 1
      %s75 = scalar_select %p72, %s73, %s74
      %p78 = pneg %p72
      %p79 = scmp.eq.s32.totalorder %s21, 1
      %p80 = por %p78, %p79
      %p81 = scmp.ne.s32.totalorder %s73, %s76
      %p82 = scmp.eq.s32.totalorder %s21, 0
      %p83 = por %p81, %p82
      %p84 = scmp.ne.s32.totalorder %s73, %s76
      %p85 = scmp.eq.s32.totalorder %s26, 1
      %p86 = por %p84, %p85
      %p87 = scmp.ne.s32.totalorder %s76, %s77
      %p88 = scmp.eq.s32.totalorder %s26, 0
      %p89 = por %p87, %p88
      %p90 = scmp.ne.s32.totalorder %s76, %s77
      %p91 = scmp.eq.s32.totalorder %s27, 1
      %p92 = por %p90, %p91
      %p94 = scmp.ne.s32.totalorder %s77, %s93
      %p95 = scmp.eq.s32.totalorder %s27, 0
      %p96 = por %p94, %p95
      %s98 = sadd.s32 %s97, 1
      %p101 = scmp.eq.s32.totalorder %s21, 1
      %p102 = scmp.ne.s32.totalorder %s97, %s99
      %p103 = scmp.eq.s32.totalorder %s21, 0
      %p104 = por %p102, %p103
      %p105 = scmp.ne.s32.totalorder %s97, %s99
      %p106 = scmp.eq.s32.totalorder %s26, 1
      %p107 = por %p105, %p106
      %p108 = scmp.ne.s32.totalorder %s99, %s100
      %p109 = scmp.eq.s32.totalorder %s26, 0
      %p110 = por %p108, %p109
      %p111 = scmp.ne.s32.totalorder %s99, %s100
      %p112 = scmp.eq.s32.totalorder %s27, 1
      %p113 = por %p111, %p112
      %p115 = scmp.ne.s32.totalorder %s100, %s114
      %p116 = scmp.eq.s32.totalorder %s27, 0
      %p117 = por %p115, %p116
      %s119 = sadd.s32 %s118, 1
      %p122 = scmp.eq.s32.totalorder %s21, 1
      %p123 = scmp.ne.s32.totalorder %s118, %s120
      %p124 = scmp.eq.s32.totalorder %s21, 0
      %p125 = por %p123, %p124
      %p126 = scmp.ne.s32.totalorder %s118, %s120
      %p127 = scmp.eq.s32.totalorder %s26, 1
      %p128 = por %p126, %p127
      %p129 = scmp.ne.s32.totalorder %s120, %s121
      %p130 = scmp.eq.s32.totalorder %s26, 0
      %p131 = por %p129, %p130
      %p132 = scmp.ne.s32.totalorder %s120, %s121
      %p133 = scmp.eq.s32.totalorder %s27, 1
      %p134 = por %p132, %p133
      %p136 = scmp.ne.s32.totalorder %s121, %s135
      %p137 = scmp.eq.s32.totalorder %s27, 0
      %p138 = por %p136, %p137
      %s140 = sadd.s32 %s139, 1
      %p143 = scmp.eq.s32.totalorder %s21, 1
      %p144 = scmp.ne.s32.totalorder %s139, %s141
      %p145 = scmp.eq.s32.totalorder %s21, 0
      %p146 = por %p144, %p145
      %p147 = scmp.ne.s32.totalorder %s139, %s141
      %p148 = scmp.eq.s32.totalorder %s26, 1
      %p149 = por %p147, %p148
      %p150 = scmp.ne.s32.totalorder %s141, %s142
      %p151 = scmp.eq.s32.totalorder %s26, 0
      %p152 = por %p150, %p151
      %p153 = scmp.ne.s32.totalorder %s141, %s142
      %p154 = scmp.eq.s32.totalorder %s27, 1
      %p155 = por %p153, %p154
      %p157 = scmp.ne.s32.totalorder %s142, %s156
      %p158 = scmp.eq.s32.totalorder %s27, 0
      %p159 = por %p157, %p158
      %s161 = sadd.s32 %s160, 1
      %p164 = scmp.eq.s32.totalorder %s21, 1
      %p165 = scmp.ne.s32.totalorder %s160, %s162
      %p166 = scmp.eq.s32.totalorder %s21, 0
      %p167 = por %p165, %p166
      %p168 = scmp.ne.s32.totalorder %s160, %s162
      %p169 = scmp.eq.s32.totalorder %s26, 1
      %p170 = por %p168, %p169
      %p171 = scmp.ne.s32.totalorder %s162, %s163
      %p172 = scmp.eq.s32.totalorder %s26, 0
      %p173 = por %p171, %p172
      %p174 = scmp.ne.s32.totalorder %s162, %s163
      %p175 = scmp.eq.s32.totalorder %s27, 1
      %p176 = por %p174, %p175
      %p178 = scmp.ne.s32.totalorder %s163, %s177
      %p179 = scmp.eq.s32.totalorder %s27, 0
      %p180 = por %p178, %p179
      %s182 = sadd.s32 %s181, 1
      %p185 = scmp.eq.s32.totalorder %s21, 1
      %p186 = scmp.ne.s32.totalorder %s181, %s183
      %p187 = scmp.eq.s32.totalorder %s21, 0
      %p188 = por %p186, %p187
      %p189 = scmp.ne.s32.totalorder %s181, %s183
      %p190 = scmp.eq.s32.totalorder %s26, 1
      %p191 = por %p189, %p190
      %p192 = scmp.ne.s32.totalorder %s183, %s184
      %p193 = scmp.eq.s32.totalorder %s26, 0
      %p194 = por %p192, %p193
      %p195 = scmp.ne.s32.totalorder %s183, %s184
      %p196 = scmp.eq.s32.totalorder %s27, 1
      %p197 = por %p195, %p196
      %p199 = scmp.ne.s32.totalorder %s184, %s198
      %p200 = scmp.eq.s32.totalorder %s27, 0
      %p201 = por %p199, %p200
      %s202 = ssub.s32 %s28, %s40
      %s203 = ssub.s32 %s29, %s36
      %s204 = sor.u32 %s202, %s203
      %p205 = scmp.eq.s32.totalorder %s204, 0
      %s207 = sadd.s32 %s206, 1
      %s208 = scalar_select %p205, %s206, %s207
      %p211 = pneg %p205
      %p212 = scmp.eq.s32.totalorder %s21, 1
      %p213 = por %p211, %p212
      %p214 = scmp.ne.s32.totalorder %s206, %s209
      %p215 = scmp.eq.s32.totalorder %s21, 0
      %p216 = por %p214, %p215
      %p217 = scmp.ne.s32.totalorder %s206, %s209
      %p218 = scmp.eq.s32.totalorder %s26, 1
      %p219 = por %p217, %p218
      %p220 = scmp.ne.s32.totalorder %s209, %s210
      %p221 = scmp.eq.s32.totalorder %s26, 0
      %p222 = por %p220, %p221
      %p223 = scmp.ne.s32.totalorder %s209, %s210
      %p224 = scmp.eq.s32.totalorder %s27, 1
      %p225 = por %p223, %p224
      %p227 = scmp.ne.s32.totalorder %s210, %s226
      %p228 = scmp.eq.s32.totalorder %s27, 0
      %p229 = por %p227, %p228
      %s230 = ssub.s32 %s28, %s40
      %s231 = ssub.s32 %s29, %s36
      %s232 = sor.u32 %s230, %s231
      %p233 = scmp.eq.s32.totalorder %s232, 0
      %s235 = sadd.s32 %s234, 1
      %s236 = scalar_select %p233, %s234, %s235
      %p239 = pneg %p233
      %p240 = scmp.eq.s32.totalorder %s21, 1
      %p241 = por %p239, %p240
      %p242 = scmp.ne.s32.totalorder %s234, %s237
      %p243 = scmp.eq.s32.totalorder %s21, 0
      %p244 = por %p242, %p243
      %p245 = scmp.ne.s32.totalorder %s234, %s237
      %p246 = scmp.eq.s32.totalorder %s26, 1
      %p247 = por %p245, %p246
      %p248 = scmp.ne.s32.totalorder %s237, %s238
      %p249 = scmp.eq.s32.totalorder %s26, 0
      %p250 = por %p248, %p249
      %p251 = scmp.ne.s32.totalorder %s237, %s238
      %p252 = scmp.eq.s32.totalorder %s27, 1
      %p253 = por %p251, %p252
      %p255 = scmp.ne.s32.totalorder %s238, %s254
      %p256 = scmp.eq.s32.totalorder %s27, 0
      %p257 = por %p255, %p256
      %p258 = scmp.le.s32.totalorder 1, %s21
      %p259 = scmp.lt.s32.totalorder %s21, 3
      %p260 = pnand %p258, %p259
      %p261 = pneg %p260
      // Predicated region
      $region9: #{tpu_custom_call.1} parent=5 // pred_check
        _
      $region10: #{tpu_custom_call.1} parent=5 // pred_check_branch
        %263 = sbr.rel (%p260) target = $region12
      $region11: #{tpu_custom_call.1} parent=5 // pred_region
        %s264 = ssub.s32 %s21, 1
        // Predicated region
        $region13: #{tpu_custom_call.1} parent=11 // pred_check
          %p265 = pneg %p110
        $region14: #{tpu_custom_call.1} parent=11 // pred_check_branch
          %267 = sbr.rel (%p265) target = $region16
        $region15: #{tpu_custom_call.1} parent=11 // pred_region
          _
        $region16: #{tpu_custom_call.1} parent=11 // pred_fallthru
          _
        // Predicated region
        $region17: #{tpu_custom_call.1} parent=11 // pred_check
          %p268 = pneg %p131
        $region18: #{tpu_custom_call.1} parent=11 // pred_check_branch
          %270 = sbr.rel (%p268) target = $region20
        $region19: #{tpu_custom_call.1} parent=11 // pred_region
          _
        $region20: #{tpu_custom_call.1} parent=11 // pred_fallthru
          _
        // Predicated region
        $region21: #{tpu_custom_call.1} parent=11 // pred_check
          %p271 = pneg %p152
        $region22: #{tpu_custom_call.1} parent=11 // pred_check_branch
          %273 = sbr.rel (%p271) target = $region24
        $region23: #{tpu_custom_call.1} parent=11 // pred_region
          _
        $region24: #{tpu_custom_call.1} parent=11 // pred_fallthru
          _
        // Predicated region
        $region25: #{tpu_custom_call.1} parent=11 // pred_check
          %p274 = pneg %p173
        $region26: #{tpu_custom_call.1} parent=11 // pred_check_branch
          %276 = sbr.rel (%p274) target = $region28
        $region27: #{tpu_custom_call.1} parent=11 // pred_region
          _
        $region28: #{tpu_custom_call.1} parent=11 // pred_fallthru
          _
        // Predicated region
        $region29: #{tpu_custom_call.1} parent=11 // pred_check
          %p277 = pneg %p194
        $region30: #{tpu_custom_call.1} parent=11 // pred_check_branch
          %279 = sbr.rel (%p277) target = $region32
        $region31: #{tpu_custom_call.1} parent=11 // pred_region
          _
        $region32: #{tpu_custom_call.1} parent=11 // pred_fallthru
          _
      $region12: #{tpu_custom_call.1} parent=5 // pred_fallthru
        _
      %p280 = scmp.lt.s32.totalorder %s21, 2
      // Predicated region
      $region33: #{tpu_custom_call.1} parent=5 // pred_check
        %p281 = pneg %p280
      $region34: #{tpu_custom_call.1} parent=5 // pred_check_branch
        %283 = sbr.rel (%p281) target = $region36
      $region35: #{tpu_custom_call.1} parent=5 // pred_region
        // Predicated region
        $region37: #{tpu_custom_call.1} parent=35 // pred_check
          %p284 = pneg %p55
        $region38: #{tpu_custom_call.1} parent=35 // pred_check_branch
          %286 = sbr.rel (%p284) target = $region40
        $region39: #{tpu_custom_call.1} parent=35 // pred_region
          %p287 = scmp.lt.s32.totalorder %s28, 1
          %s288 = scalar_select %p287, %s28, 1
          %p289 = scmp.lt.s32.totalorder %s29, 0
          %s290 = scalar_select %p289, %s29, 0
          %s291 = sadd.s32 %s290, %s288
          %s292 = smul.addr %s291, 8
          %s293 = scalar_lea.vmem %s0, %s292
        $region40: #{tpu_custom_call.1} parent=35 // pred_fallthru
          _
        // Predicated region
        $region41: #{tpu_custom_call.1} parent=35 // pred_check
          %p294 = pneg %p83
        $region42: #{tpu_custom_call.1} parent=35 // pred_check_branch
          %296 = sbr.rel (%p294) target = $region44
        $region43: #{tpu_custom_call.1} parent=35 // pred_region
          %p297 = scmp.lt.s32.totalorder %s28, 1
          %s298 = scalar_select %p297, %s28, 1
          %p299 = scmp.lt.s32.totalorder %s29, 0
          %s300 = scalar_select %p299, %s29, 0
          %s301 = sadd.s32 %s300, %s298
          %s302 = smul.addr %s301, 8
          %s303 = scalar_lea.vmem %s1, %s302
        $region44: #{tpu_custom_call.1} parent=35 // pred_fallthru
          _
      $region36: #{tpu_custom_call.1} parent=5 // pred_fallthru
        _
      %p304 = scmp.le.s32.totalorder 1, %s21
      %p305 = scmp.lt.s32.totalorder %s21, 3
      %p306 = pnand %p304, %p305
      %p307 = pneg %p306
      // Predicated region
      $region45: #{tpu_custom_call.1} parent=5 // pred_check
        _
      $region46: #{tpu_custom_call.1} parent=5 // pred_check_branch
        %309 = sbr.rel (%p306) target = $region48
      $region47: #{tpu_custom_call.1} parent=5 // pred_region
        %s310 = ssub.s32 %s21, 1
        %p311 = scmp.lt.s32.totalorder %s30, 1
        %s312 = scalar_select %p311, %s30, 1
        %p313 = scmp.lt.s32.totalorder %s31, 0
        %s314 = scalar_select %p313, %s31, 0
        %s315 = sadd.s32 %s314, %s312
        %s316 = smul.addr %s315, 8
        %s317 = scalar_lea.vmem %s0, %s316
        %p318 = pneg %p61
        %p319 = pneg %p58
        %p320 = scmp.lt.s32.totalorder %s30, 1
        %s321 = scalar_select %p320, %s30, 1
        %p322 = scmp.lt.s32.totalorder %s31, 0
        %s323 = scalar_select %p322, %s31, 0
        %s324 = sadd.s32 %s323, %s321
        %s325 = smul.addr %s324, 8
        %s326 = scalar_lea.vmem %s1, %s325
        %p327 = pneg %p89
        %p328 = pneg %p86
        %p329 = pneg %p110
        %p330 = pneg %p107
        %p331 = pneg %p131
        %p332 = pneg %p128
        %p333 = pneg %p152
        %p334 = pneg %p149
        %p335 = pneg %p173
        %p336 = pneg %p170
        %p337 = pneg %p194
        %p338 = pneg %p191
        %p339 = pneg %p222
        %p340 = pneg %p219
        %s341 = sand.u32 %s209, 1
        %s342 = scalar_lea.sflag [#allocation4], %s341
        %s343 = sand.u32 %s209, 1
        %s344 = smul.addr %s343, 8
        %s345 = scalar_lea.vmem [#allocation3], %s344
        %p346 = pneg %p250
        %p347 = pneg %p247
        %s348 = sand.u32 %s237, 1
        %s349 = scalar_lea.sflag [#allocation6], %s348
        %s350 = sand.u32 %s237, 1
        %s351 = smul.addr %s350, 8
        %s352 = scalar_lea.vmem [#allocation5], %s351
        %p353 = scmp.lt.s32.totalorder %s30, 1
        %s354 = scalar_select %p353, %s30, 1
        %p355 = scmp.lt.s32.totalorder %s31, 0
        %s356 = scalar_select %p355, %s31, 0
        %s357 = sadd.s32 %s356, %s354
        %s358 = smul.addr %s357, 8
        %s359 = scalar_lea.vmem %s0, %s358
        %p360 = scmp.lt.s32.totalorder %s30, 1
        %s361 = scalar_select %p360, %s30, 1
        %p362 = scmp.lt.s32.totalorder %s31, 0
        %s363 = scalar_select %p362, %s31, 0
        %s364 = sadd.s32 %s363, %s361
        %s365 = smul.addr %s364, 8
        %s366 = scalar_lea.vmem %s1, %s365
        %v367 = vld [vmem:[%s366] sm:$0xff]
        %369 = vrot.lane.b32.xlu0 %v367, 124
        %v370 = vpop.permute.xlu0 %369
        %vm372 = vcmask 1048544
        %373 = vst.msk [vmem:[#allocation2] sm:$0xff] %vm372, %v370
        %v374 = vld [vmem:[%s359] sm:$0xff]
        %vm375 = vcmask 130048
        %376 = vst.msk [vmem:[#allocation2 + $0x8] sm:$0xff] %vm375, %v374
        %v377 = vld [vmem:[%s2] sm:$0xff]
        %v378 = vld [vmem:[%s2 + $0x8] sm:$0xff]
        %v379 = vld [vmem:[#allocation2] sm:$0xff]
        %v380 = vld [vmem:[#allocation2 + $0x8] sm:$0xff]
        %s381 = scalar_lea.vmem %s2, 16
        %v382 = vld [vmem:[%s381] sm:$0xff]
        %v383 = vld [vmem:[%s381 + $0x8] sm:$0xff]
        %386 = vrot.lane.b32.xlu0 %v379, 2
        %v387 = vpop.permute.xlu0 %386
        %388 = vrot.lane.b32.xlu0 %v380, 2
        %v389 = vpop.permute.xlu0 %388
        %vm390 = vcmask 15360
        %v391 = vsel %vm390, %v387, %v389
        %vm393 = vcmask 64512
        %v395 = vsel %vm393, %v382, 0
        %v398 = vsel %vm393, %v383, 0
        %400 = vmatprep.subr.mxu0 0.0
        %401 = vmatpush1.msra.mxu0 %v391
        %402 = vmatprep.subr.mxu0 0.0
        %403 = vmatpush1.msra.mxu0 0.0
        %404 = vmatprep.subr.mxu0 0.0
        %405 = vmatpush1.msra.mxu0 0.0
        %406 = vmatprep.subr.mxu0 0.0
        %407 = vmatpush1.msra.mxu0 0.0
        %408 = vmatprep.subr.mxu0 0.0
        %409 = vmatpush1.msra.mxu0 0.0
        %410 = vmatprep.subr.mxu0 0.0
        %411 = vmatpush1.msra.mxu0 0.0
        %412 = vmatprep.subr.mxu0 0.0
        %413 = vmatpush1.msra.mxu0 0.0
        %414 = vmatprep.subr.mxu0 0.0
        %415 = vmatpush1.msra.mxu0 0.0
        %416 = vmatprep.subr.mxu0 0.0
        %417 = vmatpush1.msra.mxu0 0.0
        %418 = vmatprep.subr.mxu0 0.0
        %419 = vmatpush1.msra.mxu0 0.0
        %420 = vmatprep.subr.mxu0 0.0
        %421 = vmatpush1.msra.mxu0 0.0
        %422 = vmatprep.subr.mxu0 0.0
        %423 = vmatpush1.msra.mxu0 0.0
        %424 = vmatprep.subr.mxu0 0.0
        %425 = vmatpush1.msra.mxu0 0.0
        %426 = vmatprep.subr.mxu0 0.0
        %427 = vmatpush1.msra.mxu0 0.0
        %428 = vmatprep.subr.mxu0 0.0
        %429 = vmatpush1.msra.mxu0 0.0
        %430 = vmatprep.subr.mxu0 0.0
        %431 = vmatpush1.msra.mxu0 0.0
        %432 = vmatprep.subr.mxu0 0.0
        %433 = vmatpush1.msra.mxu0 0.0
        %434 = vmatprep.subr.mxu0 0.0
        %435 = vmatpush1.msra.mxu0 0.0
        %436 = vmatprep.subr.mxu0 0.0
        %437 = vmatpush1.msra.mxu0 0.0
        %438 = vmatprep.subr.mxu0 0.0
        %439 = vmatpush1.msra.mxu0 0.0
        %440 = vmatprep.subr.mxu0 0.0
        %441 = vmatpush1.msra.mxu0 0.0
        %442 = vmatprep.subr.mxu0 0.0
        %443 = vmatpush1.msra.mxu0 0.0
        %444 = vmatprep.subr.mxu0 0.0
        %445 = vmatpush1.msra.mxu0 0.0
        %446 = vmatprep.subr.mxu0 0.0
        %447 = vmatpush1.msra.mxu0 0.0
        %448 = vmatprep.subr.mxu0 0.0
        %449 = vmatpush1.msra.mxu0 0.0
        %450 = vmatprep.subr.mxu0 0.0
        %451 = vmatpush1.msra.mxu0 0.0
        %452 = vmatprep.subr.mxu0 0.0
        %453 = vmatpush1.msra.mxu0 0.0
        %454 = vmatprep.subr.mxu0 0.0
        %455 = vmatpush1.msra.mxu0 0.0
        %456 = vmatprep.subr.mxu0 0.0
        %457 = vmatpush1.msra.mxu0 0.0
        %458 = vmatprep.subr.mxu0 0.0
        %459 = vmatpush1.msra.mxu0 0.0
        %460 = vmatprep.subr.mxu0 0.0
        %461 = vmatpush1.msra.mxu0 0.0
        %462 = vmatprep.subr.mxu0 0.0
        %463 = vmatpush1.msra.mxu0 0.0
        %464 = vmatprep.mubr.f32.mxu0 0.0
        %465 = vmatmul.mubr.f32.gmra.mrb[0].mxu0 %v395
        %v466 = vpop.f32.mrb[0].mxu0
        %v467 = vadd.f32 0.0, %v466
        %v468 = vpop.f32.mrb[0].mxu0
        %469 = vmatprep.mubr.f32.mxu0 0.0
        %470 = vmatmul.mubr.f32.gmra.mrb[0].mxu0 %v398
        %v471 = vpop.f32.mrb[0].mxu0
        %v472 = vadd.f32 0.0, %v471
        %v473 = vpop.f32.mrb[0].mxu0
        %474 = vdwg.mxu0
        %475 = vrot.lane.b32.xlu0 %v379, 4
        %v476 = vpop.permute.xlu0 %475
        %477 = vrot.lane.b32.xlu0 %v380, 4
        %v478 = vpop.permute.xlu0 %477
        %vm479 = vcmask 31744
        %v480 = vsel %vm479, %v476, %v478
        %v483 = vsel %vm393, %v377, 0
        %v486 = vsel %vm393, %v378, 0
        %488 = vmatprep.subr.mxu0 0.0
        %489 = vmatpush1.msra.mxu0 %v480
        %490 = vmatprep.subr.mxu0 0.0
        %491 = vmatpush1.msra.mxu0 0.0
        %492 = vmatprep.subr.mxu0 0.0
        %493 = vmatpush1.msra.mxu0 0.0
        %494 = vmatprep.subr.mxu0 0.0
        %495 = vmatpush1.msra.mxu0 0.0
        %496 = vmatprep.subr.mxu0 0.0
        %497 = vmatpush1.msra.mxu0 0.0
        %498 = vmatprep.subr.mxu0 0.0
        %499 = vmatpush1.msra.mxu0 0.0
        %500 = vmatprep.subr.mxu0 0.0
        %501 = vmatpush1.msra.mxu0 0.0
        %502 = vmatprep.subr.mxu0 0.0
        %503 = vmatpush1.msra.mxu0 0.0
        %504 = vmatprep.subr.mxu0 0.0
        %505 = vmatpush1.msra.mxu0 0.0
        %506 = vmatprep.subr.mxu0 0.0
        %507 = vmatpush1.msra.mxu0 0.0
        %508 = vmatprep.subr.mxu0 0.0
        %509 = vmatpush1.msra.mxu0 0.0
        %510 = vmatprep.subr.mxu0 0.0
        %511 = vmatpush1.msra.mxu0 0.0
        %512 = vmatprep.subr.mxu0 0.0
        %513 = vmatpush1.msra.mxu0 0.0
        %514 = vmatprep.subr.mxu0 0.0
        %515 = vmatpush1.msra.mxu0 0.0
        %516 = vmatprep.subr.mxu0 0.0
        %517 = vmatpush1.msra.mxu0 0.0
        %518 = vmatprep.subr.mxu0 0.0
        %519 = vmatpush1.msra.mxu0 0.0
        %520 = vmatprep.subr.mxu0 0.0
        %521 = vmatpush1.msra.mxu0 0.0
        %522 = vmatprep.subr.mxu0 0.0
        %523 = vmatpush1.msra.mxu0 0.0
        %524 = vmatprep.subr.mxu0 0.0
        %525 = vmatpush1.msra.mxu0 0.0
        %526 = vmatprep.subr.mxu0 0.0
        %527 = vmatpush1.msra.mxu0 0.0
        %528 = vmatprep.subr.mxu0 0.0
        %529 = vmatpush1.msra.mxu0 0.0
        %530 = vmatprep.subr.mxu0 0.0
        %531 = vmatpush1.msra.mxu0 0.0
        %532 = vmatprep.subr.mxu0 0.0
        %533 = vmatpush1.msra.mxu0 0.0
        %534 = vmatprep.subr.mxu0 0.0
        %535 = vmatpush1.msra.mxu0 0.0
        %536 = vmatprep.subr.mxu0 0.0
        %537 = vmatpush1.msra.mxu0 0.0
        %538 = vmatprep.subr.mxu0 0.0
        %539 = vmatpush1.msra.mxu0 0.0
        %540 = vmatprep.subr.mxu0 0.0
        %541 = vmatpush1.msra.mxu0 0.0
        %542 = vmatprep.subr.mxu0 0.0
        %543 = vmatpush1.msra.mxu0 0.0
        %544 = vmatprep.subr.mxu0 0.0
        %545 = vmatpush1.msra.mxu0 0.0
        %546 = vmatprep.subr.mxu0 0.0
        %547 = vmatpush1.msra.mxu0 0.0
        %548 = vmatprep.subr.mxu0 0.0
        %549 = vmatpush1.msra.mxu0 0.0
        %550 = vmatprep.subr.mxu0 0.0
        %551 = vmatpush1.msra.mxu0 0.0
        %552 = vmatprep.mubr.f32.mxu0 0.0
        %553 = vmatmul.mubr.f32.gmra.mrb[0].mxu0 %v483
        %v554 = vpop.f32.mrb[0].mxu0
        %v555 = vadd.f32 %v467, %v554
        %v556 = vpop.f32.mrb[0].mxu0
        %557 = vmatprep.mubr.f32.mxu0 0.0
        %558 = vmatmul.mubr.f32.gmra.mrb[0].mxu0 %v486
        %v559 = vpop.f32.mrb[0].mxu0
        %v560 = vadd.f32 %v472, %v559
        %v561 = vpop.f32.mrb[0].mxu0
        %562 = vdwg.mxu0
        %s563 = scalar_lea.vmem %s2, 32
        %v564 = vld [vmem:[%s563] sm:$0xff]
        %v565 = vld [vmem:[%s563 + $0x8] sm:$0xff]
        %v567 = vsel %vm393, %v564, 0
        %v570 = vsel %vm393, %v565, 0
        %572 = vmatprep.subr.mxu0 0.0
        %573 = vmatpush1.msra.mxu0 %v380
        %574 = vmatprep.subr.mxu0 0.0
        %575 = vmatpush1.msra.mxu0 0.0
        %576 = vmatprep.subr.mxu0 0.0
        %577 = vmatpush1.msra.mxu0 0.0
        %578 = vmatprep.subr.mxu0 0.0
        %579 = vmatpush1.msra.mxu0 0.0
        %580 = vmatprep.subr.mxu0 0.0
        %581 = vmatpush1.msra.mxu0 0.0
        %582 = vmatprep.subr.mxu0 0.0
        %583 = vmatpush1.msra.mxu0 0.0
        %584 = vmatprep.subr.mxu0 0.0
        %585 = vmatpush1.msra.mxu0 0.0
        %586 = vmatprep.subr.mxu0 0.0
        %587 = vmatpush1.msra.mxu0 0.0
        %588 = vmatprep.subr.mxu0 0.0
        %589 = vmatpush1.msra.mxu0 0.0
        %590 = vmatprep.subr.mxu0 0.0
        %591 = vmatpush1.msra.mxu0 0.0
        %592 = vmatprep.subr.mxu0 0.0
        %593 = vmatpush1.msra.mxu0 0.0
        %594 = vmatprep.subr.mxu0 0.0
        %595 = vmatpush1.msra.mxu0 0.0
        %596 = vmatprep.subr.mxu0 0.0
        %597 = vmatpush1.msra.mxu0 0.0
        %598 = vmatprep.subr.mxu0 0.0
        %599 = vmatpush1.msra.mxu0 0.0
        %600 = vmatprep.subr.mxu0 0.0
        %601 = vmatpush1.msra.mxu0 0.0
        %602 = vmatprep.subr.mxu0 0.0
        %603 = vmatpush1.msra.mxu0 0.0
        %604 = vmatprep.subr.mxu0 0.0
        %605 = vmatpush1.msra.mxu0 0.0
        %606 = vmatprep.subr.mxu0 0.0
        %607 = vmatpush1.msra.mxu0 0.0
        %608 = vmatprep.subr.mxu0 0.0
        %609 = vmatpush1.msra.mxu0 0.0
        %610 = vmatprep.subr.mxu0 0.0
        %611 = vmatpush1.msra.mxu0 0.0
        %612 = vmatprep.subr.mxu0 0.0
        %613 = vmatpush1.msra.mxu0 0.0
        %614 = vmatprep.subr.mxu0 0.0
        %615 = vmatpush1.msra.mxu0 0.0
        %616 = vmatprep.subr.mxu0 0.0
        %617 = vmatpush1.msra.mxu0 0.0
        %618 = vmatprep.subr.mxu0 0.0
        %619 = vmatpush1.msra.mxu0 0.0
        %620 = vmatprep.subr.mxu0 0.0
        %621 = vmatpush1.msra.mxu0 0.0
        %622 = vmatprep.subr.mxu0 0.0
        %623 = vmatpush1.msra.mxu0 0.0
        %624 = vmatprep.subr.mxu0 0.0
        %625 = vmatpush1.msra.mxu0 0.0
        %626 = vmatprep.subr.mxu0 0.0
        %627 = vmatpush1.msra.mxu0 0.0
        %628 = vmatprep.subr.mxu0 0.0
        %629 = vmatpush1.msra.mxu0 0.0
        %630 = vmatprep.subr.mxu0 0.0
        %631 = vmatpush1.msra.mxu0 0.0
        %632 = vmatprep.subr.mxu0 0.0
        %633 = vmatpush1.msra.mxu0 0.0
        %634 = vmatprep.subr.mxu0 0.0
        %635 = vmatpush1.msra.mxu0 0.0
        %636 = vmatprep.mubr.f32.mxu0 0.0
        %637 = vmatmul.mubr.f32.gmra.mrb[0].mxu0 %v567
        %v638 = vpop.f32.mrb[0].mxu0
        %v639 = vadd.f32 0.0, %v638
        %v640 = vpop.f32.mrb[0].mxu0
        %641 = vmatprep.mubr.f32.mxu0 0.0
        %642 = vmatmul.mubr.f32.gmra.mrb[0].mxu0 %v570
        %v643 = vpop.f32.mrb[0].mxu0
        %v644 = vadd.f32 0.0, %v643
        %v645 = vpop.f32.mrb[0].mxu0
        %646 = vdwg.mxu0
        %v647 = vadd.f32 %v555, %v639
        %v648 = vadd.f32 %v560, %v644
        %v649 = vld [vmem:[%s3] sm:$0xff]
        %v650 = vld [vmem:[%s3 + $0x8] sm:$0xff]
        %652 = vset.pattern.permute.xlu0 0
        %653 = vperm.xlu0 %652, %v649
        %v654 = vpop.permute.xlu0 %653
        %657 = vset.pattern.permute.xlu0 0
        %658 = vperm.xlu0 %657, %v650
        %v659 = vpop.permute.xlu0 %658
        %v661 = vadd.f32 %v647, %v654
        %v662 = vadd.f32 %v648, %v659
        %vm663 = vcmp.gt.f32.partialorder %v661, 0.0
        %vm664 = vcmp.gt.f32.partialorder %v662, 0.0
        %v665 = vld [vmem:[%s4] sm:$0xff]
        %v666 = vld [vmem:[%s4 + $0x8] sm:$0xff]
        %668 = vset.pattern.permute.xlu0 0
        %669 = vperm.xlu0 %668, %v665
        %v670 = vpop.permute.xlu0 %669
        %673 = vset.pattern.permute.xlu0 0
        %674 = vperm.xlu0 %673, %v666
        %v675 = vpop.permute.xlu0 %674
        %v677 = vmul.f32 %v670, %v661
        %v678 = vmul.f32 %v675, %v662
        %v679 = vsel %vm663, %v661, %v677
        %v680 = vsel %vm664, %v662, %v678
        %v681 = vld [vmem:[%s5] sm:$0xff]
        %v682 = vld [vmem:[%s5 + $0x8] sm:$0xff]
        %v683 = vld [vmem:[%s6] sm:$0xff]
        %v684 = vld [vmem:[%s6 + $0x8] sm:$0xff]
        %686 = vset.pattern.permute.xlu0 0
        %687 = vperm.xlu0 %686, %v683
        %v688 = vpop.permute.xlu0 %687
        %691 = vset.pattern.permute.xlu0 0
        %692 = vperm.xlu0 %691, %v684
        %v693 = vpop.permute.xlu0 %692
        %v696 = vsel %vm375, %v681, 0
        %v699 = vsel %vm375, %v682, 0
        %701 = vmatprep.subr.mxu0 0.0
        %702 = vmatpush1.msra.mxu0 %v679
        %703 = vmatprep.subr.mxu0 0.0
        %704 = vmatpush1.msra.mxu0 %v680
        %705 = vmatprep.subr.mxu0 0.0
        %706 = vmatpush1.msra.mxu0 0.0
        %707 = vmatprep.subr.mxu0 0.0
        %708 = vmatpush1.msra.mxu0 0.0
        %709 = vmatprep.subr.mxu0 0.0
        %710 = vmatpush1.msra.mxu0 0.0
        %711 = vmatprep.subr.mxu0 0.0
        %712 = vmatpush1.msra.mxu0 0.0
        %713 = vmatprep.subr.mxu0 0.0
        %714 = vmatpush1.msra.mxu0 0.0
        %715 = vmatprep.subr.mxu0 0.0
        %716 = vmatpush1.msra.mxu0 0.0
        %717 = vmatprep.subr.mxu0 0.0
        %718 = vmatpush1.msra.mxu0 0.0
        %719 = vmatprep.subr.mxu0 0.0
        %720 = vmatpush1.msra.mxu0 0.0
        %721 = vmatprep.subr.mxu0 0.0
        %722 = vmatpush1.msra.mxu0 0.0
        %723 = vmatprep.subr.mxu0 0.0
        %724 = vmatpush1.msra.mxu0 0.0
        %725 = vmatprep.subr.mxu0 0.0
        %726 = vmatpush1.msra.mxu0 0.0
        %727 = vmatprep.subr.mxu0 0.0
        %728 = vmatpush1.msra.mxu0 0.0
        %729 = vmatprep.subr.mxu0 0.0
        %730 = vmatpush1.msra.mxu0 0.0
        %731 = vmatprep.subr.mxu0 0.0
        %732 = vmatpush1.msra.mxu0 0.0
        %733 = vmatprep.subr.mxu0 0.0
        %734 = vmatpush1.msra.mxu0 0.0
        %735 = vmatprep.subr.mxu0 0.0
        %736 = vmatpush1.msra.mxu0 0.0
        %737 = vmatprep.subr.mxu0 0.0
        %738 = vmatpush1.msra.mxu0 0.0
        %739 = vmatprep.subr.mxu0 0.0
        %740 = vmatpush1.msra.mxu0 0.0
        %741 = vmatprep.subr.mxu0 0.0
        %742 = vmatpush1.msra.mxu0 0.0
        %743 = vmatprep.subr.mxu0 0.0
        %744 = vmatpush1.msra.mxu0 0.0
        %745 = vmatprep.subr.mxu0 0.0
        %746 = vmatpush1.msra.mxu0 0.0
        %747 = vmatprep.subr.mxu0 0.0
        %748 = vmatpush1.msra.mxu0 0.0
        %749 = vmatprep.subr.mxu0 0.0
        %750 = vmatpush1.msra.mxu0 0.0
        %751 = vmatprep.subr.mxu0 0.0
        %752 = vmatpush1.msra.mxu0 0.0
        %753 = vmatprep.subr.mxu0 0.0
        %754 = vmatpush1.msra.mxu0 0.0
        %755 = vmatprep.subr.mxu0 0.0
        %756 = vmatpush1.msra.mxu0 0.0
        %757 = vmatprep.subr.mxu0 0.0
        %758 = vmatpush1.msra.mxu0 0.0
        %759 = vmatprep.subr.mxu0 0.0
        %760 = vmatpush1.msra.mxu0 0.0
        %761 = vmatprep.subr.mxu0 0.0
        %762 = vmatpush1.msra.mxu0 0.0
        %763 = vmatprep.subr.mxu0 0.0
        %764 = vmatpush1.msra.mxu0 0.0
        %765 = vmatprep.mubr.f32.mxu0 0.0
        %766 = vmatmul.mubr.f32.gmra.mrb[0].mxu0 %v696
        %v767 = vpop.f32.mrb[0].mxu0
        %v768 = vadd.f32 %v688, %v767
        %v769 = vpop.f32.mrb[0].mxu0
        %770 = vmatprep.mubr.f32.mxu0 0.0
        %771 = vmatmul.mubr.f32.gmra.mrb[0].mxu0 %v699
        %v772 = vpop.f32.mrb[0].mxu0
        %v773 = vadd.f32 %v693, %v772
        %v774 = vpop.f32.mrb[0].mxu0
        %775 = vdwg.mxu0
        %v776 = vld [vmem:[%s359] sm:$0xff]
        %v777 = vadd.f32 %v776, %v768
        %778 = vst.msk [vmem:[%s345] sm:$0xff] %vm375, %v777
        %779 = vst.msk [vmem:[%s352] sm:$0xff] %vm375, %v773
        %s780 = sand.u32 %s209, 1
        %s781 = scalar_lea.sflag [#allocation4], %s780
        %s782 = sand.u32 %s209, 1
        %s783 = smul.addr %s782, 8
        %s784 = scalar_lea.vmem [#allocation3], %s783
        %s785 = sand.u32 %s237, 1
        %s786 = scalar_lea.sflag [#allocation6], %s785
        %s787 = sand.u32 %s237, 1
        %s788 = smul.addr %s787, 8
        %s789 = scalar_lea.vmem [#allocation5], %s788
        // Predicated region
        $region49: #{tpu_custom_call.1} parent=47 // pred_check
          %p790 = pneg %p219
        $region50: #{tpu_custom_call.1} parent=47 // pred_check_branch
          %792 = sbr.rel (%p790) target = $region52
        $region51: #{tpu_custom_call.1} parent=47 // pred_region
          %s794 = ssub.s32 128, 128
          %795 = vsyncadd %s781, %s794
          %s796 = sadd.s32 %s31, %s30
          %s797 = smul.addr %s796, 128
          %s798 = scalar_lea.hbm %s7, %s797
          %s800 = sshll.u32 %s784, 4
          %s801 = int_to_ptr.vmem [resolvable:$true] %s800
          %803 = dma.vmem_to_hbm [thread:$0]  %s801, 128, %s798, %s781
        $region52: #{tpu_custom_call.1} parent=47 // pred_fallthru
          _
        // Predicated region
        $region53: #{tpu_custom_call.1} parent=47 // pred_check
          %p804 = pneg %p247
        $region54: #{tpu_custom_call.1} parent=47 // pred_check_branch
          %806 = sbr.rel (%p804) target = $region56
        $region55: #{tpu_custom_call.1} parent=47 // pred_region
          %s808 = ssub.s32 128, 128
          %809 = vsyncadd %s786, %s808
          %s810 = sadd.s32 %s31, %s30
          %s811 = smul.addr %s810, 128
          %s812 = scalar_lea.hbm %s8, %s811
          %s814 = sshll.u32 %s789, 4
          %s815 = int_to_ptr.vmem [resolvable:$true] %s814
          %817 = dma.vmem_to_hbm [thread:$0]  %s815, 128, %s812, %s786
        $region56: #{tpu_custom_call.1} parent=47 // pred_fallthru
          _
      $region48: #{tpu_custom_call.1} parent=5 // pred_fallthru
        _
      %p818 = scmp.le.s32.totalorder 2, %s21
      // Predicated region
      $region57: #{tpu_custom_call.1} parent=5 // pred_check
        %p819 = pneg %p818
      $region58: #{tpu_custom_call.1} parent=5 // pred_check_branch
        %821 = sbr.rel (%p819) target = $region60
      $region59: #{tpu_custom_call.1} parent=5 // pred_region
        %s822 = ssub.s32 %s21, 2
        // Predicated region
        $region61: #{tpu_custom_call.1} parent=59 // pred_check
          %p823 = pneg %p225
        $region62: #{tpu_custom_call.1} parent=59 // pred_check_branch
          %825 = sbr.rel (%p823) target = $region64
        $region63: #{tpu_custom_call.1} parent=59 // pred_region
          %s826 = sand.u32 %s210, 1
          %s827 = scalar_lea.sflag [#allocation4], %s826
          %s828 = sand.u32 %s210, 1
          %s829 = smul.addr %s828, 8
          %s830 = scalar_lea.vmem [#allocation3], %s829
          %831 = dma.done %s827, 128
        $region64: #{tpu_custom_call.1} parent=59 // pred_fallthru
          _
        // Predicated region
        $region65: #{tpu_custom_call.1} parent=59 // pred_check
          %p832 = pneg %p253
        $region66: #{tpu_custom_call.1} parent=59 // pred_check_branch
          %834 = sbr.rel (%p832) target = $region68
        $region67: #{tpu_custom_call.1} parent=59 // pred_region
          %s835 = sand.u32 %s238, 1
          %s836 = scalar_lea.sflag [#allocation6], %s835
          %s837 = sand.u32 %s238, 1
          %s838 = smul.addr %s837, 8
          %s839 = scalar_lea.vmem [#allocation5], %s838
          %840 = dma.done %s836, 128
        $region68: #{tpu_custom_call.1} parent=59 // pred_fallthru
          _
      $region60: #{tpu_custom_call.1} parent=5 // pred_fallthru
        _
    $region6: #{tpu_custom_call.1} parent=1 // loop_footer
      %s25 = sadd.s32 1, %s21
    $region7: #{tpu_custom_call.1} parent=1 // loop_footer_branch
      %20 = sbr.rel target = $region3
    $region8: #{tpu_custom_call.1} parent=1 // loop_exit
      _
    %841 = vsyncpa [#allocation4], 1
    %s842 = scalar_lea.sflag [#allocation4], 1
    %843 = vsyncpa %s842, 1
    %844 = vsyncpa [#allocation6], 1
    %s845 = scalar_lea.sflag [#allocation6], 1
    %846 = vsyncpa %s845, 1

</llo_original>
